<compile_context>
chip_gen: v7x
topology: tpu7x:2x2x1
jax: 0.10.0
libtpu: 0.0.40
codegen_flags: <defaults>
</compile_context>

<pallas_src>
import jax
import jax.numpy as jnp
from jax.experimental import pallas as pl
from jax.experimental.pallas import tpu as pltpu


def _round_up(x, m):
    return -(-x // m) * m


def _combo_loss_kernel(p_ref, t_ref, inter_out_ref, tpsum_out_ref, ce_out_ref,
                       inter_ref, tpsum_ref, ce_ref):
    li = pl.program_id(2)

    @pl.when(li == 0)
    def _init():
        inter_ref[...] = jnp.zeros_like(inter_ref)
        tpsum_ref[...] = jnp.zeros_like(tpsum_ref)
        ce_ref[...] = jnp.zeros_like(ce_ref)

    p = p_ref[...].astype(jnp.float32)   # (1, C, TL)
    t = t_ref[...].astype(jnp.float32)   # (1, C, TL)

    # ---- Dice partial sums, kept full-width (pure VPU adds per step) ----
    inter_ref[...] += t * p              # sum_L t*p   (per channel, lane-resident)
    tpsum_ref[...] += t + p              # sum_L (t+p) (dice denominator)

    # ---- Soft-target cross entropy over the channel axis (dim=1) ----
    #   -sum_c t*log_softmax(p) = lse * (sum_c t) - sum_c (t * (p - m))
    m = jnp.max(p, axis=1, keepdims=True)                        # (1, 1, TL)
    z = p - m
    lse = jnp.log(jnp.sum(jnp.exp(z), axis=1, keepdims=True))    # (1, 1, TL)
    t_sum = jnp.sum(t, axis=1, keepdims=True)                    # (1, 1, TL)
    tz = jnp.sum(t * z, axis=1, keepdims=True)                   # (1, 1, TL)
    ce_ref[...] += lse * t_sum - tz

    @pl.when(li == pl.num_programs(2) - 1)
    def _finalize():
        c = inter_out_ref.shape[-1]
        inter_c = jnp.sum(inter_ref[...], axis=2)                # (1, C) single lane reduce
        tpsum_c = jnp.sum(tpsum_ref[...], axis=2)                # (1, C)
        ce_v = jnp.sum(ce_ref[...])                              # scalar
        inter_out_ref[...] = inter_c.reshape(1, 1, 1, c)
        tpsum_out_ref[...] = tpsum_c.reshape(1, 1, 1, c)
        ce_out_ref[...] = jnp.broadcast_to(ce_v, (1, 1, 1, c)).astype(jnp.float32)


def _plan_tiles(L, C, B, itemsize, force_tl=None):
    """Pick the L tile (multiple of 128) from a VMEM budget; return (tl, n_blocks, vmem_est)."""
    L128 = _round_up(L, 128)
    c_in = _round_up(C, max(8, 32 // itemsize))   # input sublane packing (8 f32 / 16 bf16)
    c_acc = _round_up(C, 8)                       # f32 scratch sublane padding
    # 2 inputs x 2 pipeline buffers + (inter, tpsum, ce) f32 scratch, per lane element.
    per_lane_bytes = 2 * 2 * c_in * itemsize + (2 * c_acc + 8) * 4
    if force_tl is not None:
        tl = max(128, _round_up(int(force_tl), 128))
    else:
        budget = 12 * 1024 * 1024                 # fits v5e's 16 MiB scoped-VMEM default
        tl = max(128, (budget // per_lane_bytes) // 128 * 128)
    tl = min(tl, L128)
    n_blocks = -(-L128 // tl)
    if B == 1:
        # v7x megacore: make the L-block count even and >= 2 so it can be split
        # across two "parallel" grid entries (one per TensorCore).
        if n_blocks == 1 and L128 >= 256:
            tl = _round_up(-(-L128 // 2), 128)
            n_blocks = 2
        elif n_blocks > 1 and n_blocks % 2 == 1:
            n_blocks += 1                          # extra zero-padded block is inert
    vmem_est = per_lane_bytes * tl + (2 << 20)
    return tl, n_blocks, vmem_est


def combo_loss(predicts, targets, *, alpha=0.7, smooth=1e-5, _force_tl=None):
    assert predicts.shape == targets.shape, (predicts.shape, targets.shape)
    B, C, L = predicts.shape
    itemsize = jnp.dtype(predicts.dtype).itemsize
    tl, n_blocks, vmem_est = _plan_tiles(L, C, B, itemsize, _force_tl)
    n_lo = 2 if (B == 1 and n_blocks >= 2 and n_blocks % 2 == 0) else 1
    n_li = n_blocks // n_lo
    L_pad = n_blocks * tl

    # Zero padding is exact: padded columns contribute 0 to every Dice sum and 0 to CE
    # (their targets are 0), and the means below divide by the original B*C / B*L.
    if L_pad != L:
        pad = ((0, 0), (0, 0), (0, L_pad - L))
        predicts = jnp.pad(predicts, pad)
        targets = jnp.pad(targets, pad)

    grid = (B, n_lo, n_li)
    in_spec = pl.BlockSpec((1, C, tl), lambda b, lo, li: (b, 0, lo * n_li + li))
    out_spec = pl.BlockSpec((1, 1, 1, C), lambda b, lo, li: (b, lo, 0, 0))
    part_shape = jax.ShapeDtypeStruct((B, n_lo, 1, C), jnp.float32)

    cost = pl.CostEstimate(
        flops=10 * B * C * L_pad,
        transcendentals=B * L_pad * (C + 1),        # exp: B*C*L, log: B*L
        bytes_accessed=2 * B * C * L_pad * itemsize + 3 * B * n_lo * C * 4)

    inter_p, tpsum_p, ce_p = pl.pallas_call(
        _combo_loss_kernel,
        out_shape=(part_shape, part_shape, part_shape),
        grid_spec=pltpu.PrefetchScalarGridSpec(
            num_scalar_prefetch=0,
            grid=grid,
            in_specs=[in_spec, in_spec],
            out_specs=[out_spec, out_spec, out_spec],
            scratch_shapes=[
                pltpu.VMEM((1, C, tl), jnp.float32),   # sum_L t*p      accumulator
                pltpu.VMEM((1, C, tl), jnp.float32),   # sum_L (t+p)    accumulator
                pltpu.VMEM((1, 1, tl), jnp.float32),   # CE partial     accumulator
            ],
        ),
        compiler_params=pltpu.CompilerParams(
            dimension_semantics=("parallel", "parallel", "arbitrary"),
            vmem_limit_bytes=int(min(32 << 20, max(vmem_est, 16 << 20))),
        ),
        cost_estimate=cost,
    )(predicts, targets)

    # Tiny cross-(b, lo) combine + the nonlinear dice, outside the kernel so both
    # leading grid axes stay "parallel".
    inter = jnp.sum(inter_p[:, :, 0, :], axis=1)       # (B, C)
    tpsum = jnp.sum(tpsum_p[:, :, 0, :], axis=1)       # (B, C)
    dice_loss = jnp.mean(1.0 - (2.0 * inter + smooth) / (tpsum + smooth))
    ce_loss = jnp.sum(ce_p[:, :, 0, 0]) / (B * L)
    return alpha * dice_loss + (1.0 - alpha) * ce_loss


def combo_loss_ref(predicts, targets, *, alpha=0.7, smooth=1e-5):
    # Pure-JAX reference mirroring the PyTorch module.
    predicts = predicts.astype(jnp.float32)
    targets = targets.astype(jnp.float32)
    intersection = jnp.sum(targets * predicts, axis=2)
    denom = jnp.sum(targets, axis=2) + jnp.sum(predicts, axis=2)
    dice = jnp.mean(1.0 - (2.0 * intersection + smooth) / (denom + smooth))
    logp = jax.nn.log_softmax(predicts, axis=1)
    ce = jnp.mean(-jnp.sum(targets * logp, axis=1))
    return alpha * dice + (1.0 - alpha) * ce


if __name__ == "__main__":
    key = jax.random.PRNGKey(0)
    k1, k2, k3, k4, k5, k6 = jax.random.split(key, 6)

    # Small shape consistent with the module: (B, C, L) = (2, 4, 16).
    p1 = jax.random.normal(k1, (2, 4, 16), dtype=jnp.float32)                  # raw logits
    t1 = jax.nn.softmax(jax.random.normal(k2, (2, 4, 16), dtype=jnp.float32), axis=1)
    out1 = combo_loss(p1, t1)
    jax.block_until_ready(out1)
    ref1 = combo_loss_ref(p1, t1)
    assert jnp.allclose(out1, ref1, atol=1e-5, rtol=1e-5), (out1, ref1)

    # Multi-step accumulation + non-128-multiple L (padding path), forced small tile.
    p2 = jax.random.normal(k3, (2, 8, 1000), dtype=jnp.float32)
    t2 = jax.nn.softmax(jax.random.normal(k4, (2, 8, 1000), dtype=jnp.float32), axis=1)
    out2 = combo_loss(p2, t2, _force_tl=256)
    jax.block_until_ready(out2)
    ref2 = combo_loss_ref(p2, t2)
    assert jnp.allclose(out2, ref2, atol=1e-4, rtol=1e-4), (out2, ref2)

    # B == 1 exercises the two-way "parallel" split of the L-block axis; bf16 inputs
    # (half the HBM traffic) are upcast and accumulated in f32 in-kernel.
    p3 = jax.random.normal(k5, (1, 8, 1024), dtype=jnp.float32).astype(jnp.bfloat16)
    t3 = jax.nn.softmax(jax.random.normal(k6, (1, 8, 1024), dtype=jnp.float32),
                        axis=1).astype(jnp.bfloat16)
    out3 = combo_loss(p3, t3, _force_tl=256)
    jax.block_until_ready(out3)
    ref3 = combo_loss_ref(p3, t3)
    assert jnp.allclose(out3, ref3, atol=1e-4, rtol=1e-4), (out3, ref3)

    print("KERNEL_OK")
</pallas_src>

<mosaic_0001>
module attributes {stable_mosaic.version = 11 : i64} {
  func.func @_combo_loss_kernel(%arg0: i32, %arg1: i32, %arg2: i32, %arg3: memref<1x4x128xf32, #tpu.memory_space<vmem>>, %arg4: memref<1x4x128xf32, #tpu.memory_space<vmem>>, %arg5: memref<1x1x1x4xf32, #tpu.memory_space<vmem>>, %arg6: memref<1x1x1x4xf32, #tpu.memory_space<vmem>>, %arg7: memref<1x1x1x4xf32, #tpu.memory_space<vmem>>, %arg8: memref<1x4x128xf32, #tpu.memory_space<vmem>>, %arg9: memref<1x4x128xf32, #tpu.memory_space<vmem>>, %arg10: memref<1x1x128xf32, #tpu.memory_space<vmem>>) attributes {dimension_semantics = [#tpu.dimension_semantics<parallel>, #tpu.dimension_semantics<parallel>, #tpu.dimension_semantics<arbitrary>], iteration_bounds = array<i64: 2, 1, 1>, scalar_prefetch = 0 : i64, scratch_operands = 3 : i64, tpu.core_type = #tpu.core_type<tc>, window_params = [{transform_indices = @transform_0, window_bounds = array<i64: 1, 4, 128>}, {transform_indices = @transform_1, window_bounds = array<i64: 1, 4, 128>}, {transform_indices = @transform_2, window_bounds = array<i64: 1, 1, 1, 4>}, {transform_indices = @transform_3, window_bounds = array<i64: 1, 1, 1, 4>}, {transform_indices = @transform_4, window_bounds = array<i64: 1, 1, 1, 4>}]} {
    %c0_i32 = arith.constant 0 : i32
    %0 = arith.cmpi eq, %arg2, %c0_i32 : i32
    %1 = arith.extui %0 : i1 to i32
    %c0_i32_0 = arith.constant 0 : i32
    %2 = arith.cmpi ne, %1, %c0_i32_0 : i32
    scf.if %2 {
      %cst_29 = arith.constant 0.000000e+00 : f32
      %34 = vector.broadcast %cst_29 : f32 to vector<1x4x128xf32>
      %c0_30 = arith.constant 0 : index
      %c0_31 = arith.constant 0 : index
      %c0_32 = arith.constant 0 : index
      %35 = vector.load %arg8[%c0_30, %c0_31, %c0_32] : memref<1x4x128xf32, #tpu.memory_space<vmem>>, vector<1x4x128xf32>
      tpu.vector_store %arg8[%c0_30, %c0_31, %c0_32], %34 {strides = array<i32>} : memref<1x4x128xf32, #tpu.memory_space<vmem>>, vector<1x4x128xf32>,
      %cst_33 = arith.constant 0.000000e+00 : f32
      %36 = vector.broadcast %cst_33 : f32 to vector<1x4x128xf32>
      %c0_34 = arith.constant 0 : index
      %c0_35 = arith.constant 0 : index
      %c0_36 = arith.constant 0 : index
      %37 = vector.load %arg9[%c0_34, %c0_35, %c0_36] : memref<1x4x128xf32, #tpu.memory_space<vmem>>, vector<1x4x128xf32>
      tpu.vector_store %arg9[%c0_34, %c0_35, %c0_36], %36 {strides = array<i32>} : memref<1x4x128xf32, #tpu.memory_space<vmem>>, vector<1x4x128xf32>,
      %cst_37 = arith.constant 0.000000e+00 : f32
      %38 = vector.broadcast %cst_37 : f32 to vector<1x1x128xf32>
      %c0_38 = arith.constant 0 : index
      %c0_39 = arith.constant 0 : index
      %c0_40 = arith.constant 0 : index
      %39 = vector.load %arg10[%c0_38, %c0_39, %c0_40] : memref<1x1x128xf32, #tpu.memory_space<vmem>>, vector<1x1x128xf32>
      tpu.vector_store %arg10[%c0_38, %c0_39, %c0_40], %38 {strides = array<i32>} : memref<1x1x128xf32, #tpu.memory_space<vmem>>, vector<1x1x128xf32>,
    } else {
    }
    %c0 = arith.constant 0 : index
    %c0_1 = arith.constant 0 : index
    %c0_2 = arith.constant 0 : index
    %3 = vector.load %arg3[%c0, %c0_1, %c0_2] : memref<1x4x128xf32, #tpu.memory_space<vmem>>, vector<1x4x128xf32>
    %c0_3 = arith.constant 0 : index
    %c0_4 = arith.constant 0 : index
    %c0_5 = arith.constant 0 : index
    %4 = vector.load %arg4[%c0_3, %c0_4, %c0_5] : memref<1x4x128xf32, #tpu.memory_space<vmem>>, vector<1x4x128xf32>
    %c0_6 = arith.constant 0 : index
    %c0_7 = arith.constant 0 : index
    %c0_8 = arith.constant 0 : index
    %5 = vector.load %arg8[%c0_6, %c0_7, %c0_8] : memref<1x4x128xf32, #tpu.memory_space<vmem>>, vector<1x4x128xf32>
    %6 = arith.mulf %4, %3 : vector<1x4x128xf32>
    %7 = arith.addf %5, %6 : vector<1x4x128xf32>
    %c0_9 = arith.constant 0 : index
    %c0_10 = arith.constant 0 : index
    %c0_11 = arith.constant 0 : index
    %8 = vector.load %arg8[%c0_9, %c0_10, %c0_11] : memref<1x4x128xf32, #tpu.memory_space<vmem>>, vector<1x4x128xf32>
    tpu.vector_store %arg8[%c0_9, %c0_10, %c0_11], %7 {strides = array<i32>} : memref<1x4x128xf32, #tpu.memory_space<vmem>>, vector<1x4x128xf32>,
    %c0_12 = arith.constant 0 : index
    %c0_13 = arith.constant 0 : index
    %c0_14 = arith.constant 0 : index
    %9 = vector.load %arg9[%c0_12, %c0_13, %c0_14] : memref<1x4x128xf32, #tpu.memory_space<vmem>>, vector<1x4x128xf32>
    %10 = arith.addf %4, %3 : vector<1x4x128xf32>
    %11 = arith.addf %9, %10 : vector<1x4x128xf32>
    %c0_15 = arith.constant 0 : index
    %c0_16 = arith.constant 0 : index
    %c0_17 = arith.constant 0 : index
    %12 = vector.load %arg9[%c0_15, %c0_16, %c0_17] : memref<1x4x128xf32, #tpu.memory_space<vmem>>, vector<1x4x128xf32>
    tpu.vector_store %arg9[%c0_15, %c0_16, %c0_17], %11 {strides = array<i32>} : memref<1x4x128xf32, #tpu.memory_space<vmem>>, vector<1x4x128xf32>,
    %cst = arith.constant dense<0xFF800000> : vector<1x128xf32>
    %13 = vector.multi_reduction <maximumf>, %3, %cst [1] : vector<1x4x128xf32> to vector<1x128xf32>
    %14 = vector.shape_cast %13 : vector<1x128xf32> to vector<1x1x128xf32>
    %15 = vector.broadcast %14 : vector<1x1x128xf32> to vector<1x4x128xf32>
    %16 = arith.subf %3, %15 : vector<1x4x128xf32>
    %17 = math.exp %16 : vector<1x4x128xf32>
    %cst_18 = arith.constant dense<0.000000e+00> : vector<1x128xf32>
    %18 = vector.multi_reduction <add>, %17, %cst_18 [1] : vector<1x4x128xf32> to vector<1x128xf32>
    %19 = vector.shape_cast %18 : vector<1x128xf32> to vector<1x1x128xf32>
    %20 = math.log %19 : vector<1x1x128xf32>
    %cst_19 = arith.constant dense<0.000000e+00> : vector<1x128xf32>
    %21 = vector.multi_reduction <add>, %4, %cst_19 [1] : vector<1x4x128xf32> to vector<1x128xf32>
    %22 = vector.shape_cast %21 : vector<1x128xf32> to vector<1x1x128xf32>
    %23 = arith.mulf %4, %16 : vector<1x4x128xf32>
    %cst_20 = arith.constant dense<0.000000e+00> : vector<1x128xf32>
    %24 = vector.multi_reduction <add>, %23, %cst_20 [1] : vector<1x4x128xf32> to vector<1x128xf32>
    %25 = vector.shape_cast %24 : vector<1x128xf32> to vector<1x1x128xf32>
    %c0_21 = arith.constant 0 : index
    %c0_22 = arith.constant 0 : index
    %c0_23 = arith.constant 0 : index
    %26 = vector.load %arg10[%c0_21, %c0_22, %c0_23] : memref<1x1x128xf32, #tpu.memory_space<vmem>>, vector<1x1x128xf32>
    %27 = arith.mulf %20, %22 : vector<1x1x128xf32>
    %28 = arith.subf %27, %25 : vector<1x1x128xf32>
    %29 = arith.addf %26, %28 : vector<1x1x128xf32>
    %c0_24 = arith.constant 0 : index
    %c0_25 = arith.constant 0 : index
    %c0_26 = arith.constant 0 : index
    %30 = vector.load %arg10[%c0_24, %c0_25, %c0_26] : memref<1x1x128xf32, #tpu.memory_space<vmem>>, vector<1x1x128xf32>
    tpu.vector_store %arg10[%c0_24, %c0_25, %c0_26], %29 {strides = array<i32>} : memref<1x1x128xf32, #tpu.memory_space<vmem>>, vector<1x1x128xf32>,
    %c0_i32_27 = arith.constant 0 : i32
    %31 = arith.cmpi eq, %arg2, %c0_i32_27 : i32
    %32 = arith.extui %31 : i1 to i32
    %c0_i32_28 = arith.constant 0 : i32
    %33 = arith.cmpi ne, %32, %c0_i32_28 : i32
    scf.if %33 {
      %c0_29 = arith.constant 0 : index
      %c0_30 = arith.constant 0 : index
      %c0_31 = arith.constant 0 : index
      %34 = vector.load %arg8[%c0_29, %c0_30, %c0_31] : memref<1x4x128xf32, #tpu.memory_space<vmem>>, vector<1x4x128xf32>
      %cst_32 = arith.constant dense<0.000000e+00> : vector<1x4xf32>
      %35 = vector.multi_reduction <add>, %34, %cst_32 [2] : vector<1x4x128xf32> to vector<1x4xf32>
      %c0_33 = arith.constant 0 : index
      %c0_34 = arith.constant 0 : index
      %c0_35 = arith.constant 0 : index
      %36 = vector.load %arg9[%c0_33, %c0_34, %c0_35] : memref<1x4x128xf32, #tpu.memory_space<vmem>>, vector<1x4x128xf32>
      %cst_36 = arith.constant dense<0.000000e+00> : vector<1x4xf32>
      %37 = vector.multi_reduction <add>, %36, %cst_36 [2] : vector<1x4x128xf32> to vector<1x4xf32>
      %c0_37 = arith.constant 0 : index
      %c0_38 = arith.constant 0 : index
      %c0_39 = arith.constant 0 : index
      %38 = vector.load %arg10[%c0_37, %c0_38, %c0_39] : memref<1x1x128xf32, #tpu.memory_space<vmem>>, vector<1x1x128xf32>
      %39 = vector.shape_cast %38 : vector<1x1x128xf32> to vector<1x1x1x128xf32>
      %cst_40 = arith.constant dense<0.000000e+00> : vector<1xf32>
      %40 = vector.multi_reduction <add>, %39, %cst_40 [1, 2, 3] : vector<1x1x1x128xf32> to vector<1xf32>
      %41 = vector.shape_cast %40 : vector<1xf32> to vector<1x1x1x1xf32>
      %42 = vector.extract %41[0, 0, 0, 0] : f32 from vector<1x1x1x1xf32>
      %43 = vector.shape_cast %35 : vector<1x4xf32> to vector<1x1x1x4xf32>
      %c0_41 = arith.constant 0 : index
      %c0_42 = arith.constant 0 : index
      %c0_43 = arith.constant 0 : index
      %c0_44 = arith.constant 0 : index
      %44 = vector.load %arg5[%c0_41, %c0_42, %c0_43, %c0_44] : memref<1x1x1x4xf32, #tpu.memory_space<vmem>>, vector<1x1x1x4xf32>
      tpu.vector_store %arg5[%c0_41, %c0_42, %c0_43, %c0_44], %43 {strides = array<i32>} : memref<1x1x1x4xf32, #tpu.memory_space<vmem>>, vector<1x1x1x4xf32>,
      %45 = vector.shape_cast %37 : vector<1x4xf32> to vector<1x1x1x4xf32>
      %c0_45 = arith.constant 0 : index
      %c0_46 = arith.constant 0 : index
      %c0_47 = arith.constant 0 : index
      %c0_48 = arith.constant 0 : index
      %46 = vector.load %arg6[%c0_45, %c0_46, %c0_47, %c0_48] : memref<1x1x1x4xf32, #tpu.memory_space<vmem>>, vector<1x1x1x4xf32>
      tpu.vector_store %arg6[%c0_45, %c0_46, %c0_47, %c0_48], %45 {strides = array<i32>} : memref<1x1x1x4xf32, #tpu.memory_space<vmem>>, vector<1x1x1x4xf32>,
      %47 = vector.broadcast %42 : f32 to vector<1x1x1x4xf32>
      %c0_49 = arith.constant 0 : index
      %c0_50 = arith.constant 0 : index
      %c0_51 = arith.constant 0 : index
      %c0_52 = arith.constant 0 : index
      %48 = vector.load %arg7[%c0_49, %c0_50, %c0_51, %c0_52] : memref<1x1x1x4xf32, #tpu.memory_space<vmem>>, vector<1x1x1x4xf32>
      tpu.vector_store %arg7[%c0_49, %c0_50, %c0_51, %c0_52], %47 {strides = array<i32>} : memref<1x1x1x4xf32, #tpu.memory_space<vmem>>, vector<1x1x1x4xf32>,
    } else {
    }
    return
  }
  func.func @transform_0(%arg0: i32, %arg1: i32, %arg2: i32) -> (i32, i32, i32) {
    %c1_i32 = arith.constant 1 : i32
    %0 = arith.muli %arg1, %c1_i32 : i32
    %1 = arith.addi %0, %arg2 : i32
    %c0_i32 = arith.constant 0 : i32
    %c0_i32_0 = arith.constant 0 : i32
    return %arg0, %c0_i32, %1 : i32, i32, i32
  }
  func.func @transform_1(%arg0: i32, %arg1: i32, %arg2: i32) -> (i32, i32, i32) {
    %c1_i32 = arith.constant 1 : i32
    %0 = arith.muli %arg1, %c1_i32 : i32
    %1 = arith.addi %0, %arg2 : i32
    %c0_i32 = arith.constant 0 : i32
    %c0_i32_0 = arith.constant 0 : i32
    return %arg0, %c0_i32, %1 : i32, i32, i32
  }
  func.func @transform_2(%arg0: i32, %arg1: i32, %arg2: i32) -> (i32, i32, i32, i32) {
    %c0_i32 = arith.constant 0 : i32
    %c0_i32_0 = arith.constant 0 : i32
    %c0_i32_1 = arith.constant 0 : i32
    return %arg0, %arg1, %c0_i32, %c0_i32_0 : i32, i32, i32, i32
  }
  func.func @transform_3(%arg0: i32, %arg1: i32, %arg2: i32) -> (i32, i32, i32, i32) {
    %c0_i32 = arith.constant 0 : i32
    %c0_i32_0 = arith.constant 0 : i32
    %c0_i32_1 = arith.constant 0 : i32
    return %arg0, %arg1, %c0_i32, %c0_i32_0 : i32, i32, i32, i32
  }
  func.func @transform_4(%arg0: i32, %arg1: i32, %arg2: i32) -> (i32, i32, i32, i32) {
    %c0_i32 = arith.constant 0 : i32
    %c0_i32_0 = arith.constant 0 : i32
    %c0_i32_1 = arith.constant 0 : i32
    return %arg0, %arg1, %c0_i32, %c0_i32_0 : i32, i32, i32, i32
  }
}

</mosaic_0001>

<llo_original>
// kernel: tpu_custom_call.1
$region0: #{tpu_custom_call.1}
  #allocation0 [shape = 'u32[]', space=smem, size = 0x4, offset = 0x4, fixed_abs, tag = 'smem constant byte address 0x4 - core index']
  #allocation1 [shape = 'u32[144,128]{1,0:T(1,128)}', space=vmem, size = 0x12000, scoped, tag = 'internal scratch']
  #allocation2 [shape = 'f32[1,4,128]{2,1,0:T(4,128)}', space=vmem, size = 0x800, scoped, tag = 'scratch operand']
  #allocation3 [shape = 'f32[1,4,128]{2,1,0:T(4,128)}', space=vmem, size = 0x800, scoped, tag = 'scratch operand']
  #allocation4 [shape = 'f32[1,1,128]{2,1,0:T(1,128)}', space=vmem, size = 0x200, scoped, tag = 'scratch operand']
  %s0 = inlined_call_operand.hbm [shape: f32[2,4,128], index: 0, kind: input, shape index: {}]
  %s1 = inlined_call_operand.hbm [shape: f32[2,4,128], index: 1, kind: input, shape index: {}]
  %s2 = inlined_call_operand.hbm [shape: f32[2,1,1,4], index: 2, kind: output, shape index: {0}]
  %s3 = inlined_call_operand.hbm [shape: f32[2,1,1,4], index: 3, kind: output, shape index: {1}]
  %s4 = inlined_call_operand.hbm [shape: f32[2,1,1,4], index: 4, kind: output, shape index: {2}]
  %5 = xla_tuple %s2, %s3, %s4
  %s6 = sld [smem:[#allocation0]]
  $region73: #{tpu_custom_call.1} parent=0
    _
  %s8 = ssub.s32 1, %s6
  %s9 = scalar_select 0, %s8, %s6
  $region1: #{tpu_custom_call.1} parent=0
    #allocation5 [shape = 'u8[4096]{0}', space=vmem, size = 0x1000, scoped, tag = 'input window, operand 0']
    #allocation6 [shape = 's32[2]{0}', space=sflag, size = 0x8, scoped, tag = 'scoped memory for tpu_custom_call.1']
    #allocation7 [shape = 's32[2]{0}', space=sflag, size = 0x8, scoped, tag = 'scoped memory for tpu_custom_call.1']
    #allocation8 [shape = 'u8[4096]{0}', space=vmem, size = 0x1000, scoped, tag = 'input window, operand 1']
    #allocation9 [shape = 's32[2]{0}', space=sflag, size = 0x8, scoped, tag = 'scoped memory for tpu_custom_call.1']
    #allocation10 [shape = 'u8[1024]{0}', space=vmem, size = 0x400, scoped, tag = 'output window, operand 0']
    #allocation11 [shape = 'u8[1024]{0}', space=vmem, size = 0x400, scoped, tag = 'output window, operand 1']
    #allocation12 [shape = 's32[2]{0}', space=sflag, size = 0x8, scoped, tag = 'scoped memory for tpu_custom_call.1']
    #allocation13 [shape = 'u8[1024]{0}', space=vmem, size = 0x400, scoped, tag = 'output window, operand 2']
    %10 = vsyncpa [#allocation6], 0
    %s11 = scalar_lea.sflag [#allocation6], 1
    %12 = vsyncpa %s11, 0
    %13 = vsyncpa [#allocation9], 0
    %s14 = scalar_lea.sflag [#allocation9], 1
    %15 = vsyncpa %s14, 0
    %16 = vsyncpa [#allocation7], 0
    %s17 = scalar_lea.sflag [#allocation7], 1
    %18 = vsyncpa %s17, 0
    %19 = vsyncpa [#allocation12], 0
    %s20 = scalar_lea.sflag [#allocation12], 1
    %21 = vsyncpa %s20, 0
    loop: start=0, step=1, limit=4
    $region2: #{tpu_custom_call.1} parent=1 // loop_pre_header
      _
    $region3: #{tpu_custom_call.1} parent=1 // loop_header
      %s23 = sphi 0, %s27
      %p24 = scmp.ge.s32.totalorder %s23, 4
      %s30 = sphi 0, %s49
      %s31 = sphi 0, %s45
      %s32 = sphi 0, %s41
      %s33 = sphi 0, %s30
      %s34 = sphi 0, %s31
      %s35 = sphi 0, %s32
      %s36 = sphi 0, %s33
      %s37 = sphi 0, %s34
      %s38 = sphi 0, %s35
      %s56 = sphi 0, %s58
      %s59 = sphi 0, %s56
      %s60 = sphi 0, %s59
      %s76 = sphi 0, %s60
      %s86 = sphi 0, %s88
      %s89 = sphi 0, %s86
      %s90 = sphi 0, %s89
      %s106 = sphi 0, %s90
      %s114 = sphi 0, %s116
      %s117 = sphi 0, %s114
      %s118 = sphi 0, %s117
      %s134 = sphi 0, %s118
      %s142 = sphi 0, %s144
      %s145 = sphi 0, %s142
      %s146 = sphi 0, %s145
      %s162 = sphi 0, %s146
      %s170 = sphi 0, %s172
      %s173 = sphi 0, %s170
      %s174 = sphi 0, %s173
      %s190 = sphi 0, %s174
    $region4: #{tpu_custom_call.1} parent=1 // loop_header_branch
      %26 = sbr.rel (%p24) target = $region8
    $region5: #{tpu_custom_call.1} parent=1 // loop_body
      %s28 = ssub.s32 %s23, 1
      %s29 = ssub.s32 %s23, 2
      %s39 = sadd.s32 1, %s32
      %p40 = scmp.ge.s32.totalorder %s39, 1
      %s41 = scalar_select %p40, 0, %s39
      %s42 = sadd.s32 1, %s31
      %s43 = scalar_select %p40, %s42, %s31
      %p44 = scmp.ge.s32.totalorder %s43, 1
      %s45 = scalar_select %p44, 0, %s43
      %s46 = sadd.s32 1, %s30
      %s47 = scalar_select %p44, %s46, %s30
      %p48 = scmp.ge.s32.totalorder %s47, 2
      %s49 = scalar_select %p48, 0, %s47
      %s50 = sadd.s32 %s31, %s32
      %s51 = sadd.s32 %s45, %s41
      %s52 = ssub.s32 %s30, %s49
      %s53 = ssub.s32 %s50, %s51
      %s54 = sor.u32 %s52, %s53
      %p55 = scmp.eq.s32.totalorder %s54, 0
      %s57 = sadd.s32 %s56, 1
      %s58 = scalar_select %p55, %s56, %s57
      %p61 = pneg %p55
      %p62 = scmp.eq.s32.totalorder %s23, 1
      %p63 = por %p61, %p62
      %p64 = scmp.ne.s32.totalorder %s56, %s59
      %p65 = scmp.eq.s32.totalorder %s23, 0
      %p66 = por %p64, %p65
      %p67 = scmp.ne.s32.totalorder %s56, %s59
      %p68 = scmp.eq.s32.totalorder %s28, 1
      %p69 = por %p67, %p68
      %p70 = scmp.ne.s32.totalorder %s59, %s60
      %p71 = scmp.eq.s32.totalorder %s28, 0
      %p72 = por %p70, %p71
      %p73 = scmp.ne.s32.totalorder %s59, %s60
      %p74 = scmp.eq.s32.totalorder %s29, 1
      %p75 = por %p73, %p74
      %p77 = scmp.ne.s32.totalorder %s60, %s76
      %p78 = scmp.eq.s32.totalorder %s29, 0
      %p79 = por %p77, %p78
      %s80 = sadd.s32 %s31, %s32
      %s81 = sadd.s32 %s45, %s41
      %s82 = ssub.s32 %s30, %s49
      %s83 = ssub.s32 %s80, %s81
      %s84 = sor.u32 %s82, %s83
      %p85 = scmp.eq.s32.totalorder %s84, 0
      %s87 = sadd.s32 %s86, 1
      %s88 = scalar_select %p85, %s86, %s87
      %p91 = pneg %p85
      %p92 = scmp.eq.s32.totalorder %s23, 1
      %p93 = por %p91, %p92
      %p94 = scmp.ne.s32.totalorder %s86, %s89
      %p95 = scmp.eq.s32.totalorder %s23, 0
      %p96 = por %p94, %p95
      %p97 = scmp.ne.s32.totalorder %s86, %s89
      %p98 = scmp.eq.s32.totalorder %s28, 1
      %p99 = por %p97, %p98
      %p100 = scmp.ne.s32.totalorder %s89, %s90
      %p101 = scmp.eq.s32.totalorder %s28, 0
      %p102 = por %p100, %p101
      %p103 = scmp.ne.s32.totalorder %s89, %s90
      %p104 = scmp.eq.s32.totalorder %s29, 1
      %p105 = por %p103, %p104
      %p107 = scmp.ne.s32.totalorder %s90, %s106
      %p108 = scmp.eq.s32.totalorder %s29, 0
      %p109 = por %p107, %p108
      %s110 = ssub.s32 %s30, %s49
      %s111 = ssub.s32 %s31, %s45
      %s112 = sor.u32 %s110, %s111
      %p113 = scmp.eq.s32.totalorder %s112, 0
      %s115 = sadd.s32 %s114, 1
      %s116 = scalar_select %p113, %s114, %s115
      %p119 = pneg %p113
      %p120 = scmp.eq.s32.totalorder %s23, 1
      %p121 = por %p119, %p120
      %p122 = scmp.ne.s32.totalorder %s114, %s117
      %p123 = scmp.eq.s32.totalorder %s23, 0
      %p124 = por %p122, %p123
      %p125 = scmp.ne.s32.totalorder %s114, %s117
      %p126 = scmp.eq.s32.totalorder %s28, 1
      %p127 = por %p125, %p126
      %p128 = scmp.ne.s32.totalorder %s117, %s118
      %p129 = scmp.eq.s32.totalorder %s28, 0
      %p130 = por %p128, %p129
      %p131 = scmp.ne.s32.totalorder %s117, %s118
      %p132 = scmp.eq.s32.totalorder %s29, 1
      %p133 = por %p131, %p132
      %p135 = scmp.ne.s32.totalorder %s118, %s134
      %p136 = scmp.eq.s32.totalorder %s29, 0
      %p137 = por %p135, %p136
      %s138 = ssub.s32 %s30, %s49
      %s139 = ssub.s32 %s31, %s45
      %s140 = sor.u32 %s138, %s139
      %p141 = scmp.eq.s32.totalorder %s140, 0
      %s143 = sadd.s32 %s142, 1
      %s144 = scalar_select %p141, %s142, %s143
      %p147 = pneg %p141
      %p148 = scmp.eq.s32.totalorder %s23, 1
      %p149 = por %p147, %p148
      %p150 = scmp.ne.s32.totalorder %s142, %s145
      %p151 = scmp.eq.s32.totalorder %s23, 0
      %p152 = por %p150, %p151
      %p153 = scmp.ne.s32.totalorder %s142, %s145
      %p154 = scmp.eq.s32.totalorder %s28, 1
      %p155 = por %p153, %p154
      %p156 = scmp.ne.s32.totalorder %s145, %s146
      %p157 = scmp.eq.s32.totalorder %s28, 0
      %p158 = por %p156, %p157
      %p159 = scmp.ne.s32.totalorder %s145, %s146
      %p160 = scmp.eq.s32.totalorder %s29, 1
      %p161 = por %p159, %p160
      %p163 = scmp.ne.s32.totalorder %s146, %s162
      %p164 = scmp.eq.s32.totalorder %s29, 0
      %p165 = por %p163, %p164
      %s166 = ssub.s32 %s30, %s49
      %s167 = ssub.s32 %s31, %s45
      %s168 = sor.u32 %s166, %s167
      %p169 = scmp.eq.s32.totalorder %s168, 0
      %s171 = sadd.s32 %s170, 1
      %s172 = scalar_select %p169, %s170, %s171
      %p175 = pneg %p169
      %p176 = scmp.eq.s32.totalorder %s23, 1
      %p177 = por %p175, %p176
      %p178 = scmp.ne.s32.totalorder %s170, %s173
      %p179 = scmp.eq.s32.totalorder %s23, 0
      %p180 = por %p178, %p179
      %p181 = scmp.ne.s32.totalorder %s170, %s173
      %p182 = scmp.eq.s32.totalorder %s28, 1
      %p183 = por %p181, %p182
      %p184 = scmp.ne.s32.totalorder %s173, %s174
      %p185 = scmp.eq.s32.totalorder %s28, 0
      %p186 = por %p184, %p185
      %p187 = scmp.ne.s32.totalorder %s173, %s174
      %p188 = scmp.eq.s32.totalorder %s29, 1
      %p189 = por %p187, %p188
      %p191 = scmp.ne.s32.totalorder %s174, %s190
      %p192 = scmp.eq.s32.totalorder %s29, 0
      %p193 = por %p191, %p192
      %p194 = scmp.le.s32.totalorder 1, %s23
      %p195 = scmp.lt.s32.totalorder %s23, 3
      %p196 = pnand %p194, %p195
      %p197 = pneg %p196
      // Predicated region
      $region9: #{tpu_custom_call.1} parent=5 // pred_check
        _
      $region10: #{tpu_custom_call.1} parent=5 // pred_check_branch
        %199 = sbr.rel (%p196) target = $region12
      $region11: #{tpu_custom_call.1} parent=5 // pred_region
        %s200 = ssub.s32 %s23, 1
      $region12: #{tpu_custom_call.1} parent=5 // pred_fallthru
        _
      %p201 = scmp.lt.s32.totalorder %s23, 2
      // Predicated region
      $region13: #{tpu_custom_call.1} parent=5 // pred_check
        %p202 = pneg %p201
      $region14: #{tpu_custom_call.1} parent=5 // pred_check_branch
        %204 = sbr.rel (%p202) target = $region16
      $region15: #{tpu_custom_call.1} parent=5 // pred_region
        // Predicated region
        $region17: #{tpu_custom_call.1} parent=15 // pred_check
          %p205 = pneg %p66
        $region18: #{tpu_custom_call.1} parent=15 // pred_check_branch
          %207 = sbr.rel (%p205) target = $region20
        $region19: #{tpu_custom_call.1} parent=15 // pred_region
          %s208 = sand.u32 %s56, 1
          %s209 = scalar_lea.sflag [#allocation6], %s208
          %s210 = sand.u32 %s56, 1
          %s211 = smul.addr %s210, 4
          %s212 = scalar_lea.vmem [#allocation5], %s211
          %s213 = sadd.s32 %s31, %s32
          %s215 = ssub.s32 64, 64
          %216 = vsyncadd %s209, %s215
          %s217 = sadd.s32 %s213, %s30
          %s218 = smul.addr %s217, 64
          %s219 = scalar_lea.hbm %s0, %s218
          %s221 = sshll.u32 %s212, 4
          %s222 = int_to_ptr.vmem [resolvable:$true] %s221
          %224 = dma.hbm_to_vmem [thread:$0]  %s219, 64, %s222, %s209
        $region20: #{tpu_custom_call.1} parent=15 // pred_fallthru
          _
        // Predicated region
        $region21: #{tpu_custom_call.1} parent=15 // pred_check
          %p225 = pneg %p96
        $region22: #{tpu_custom_call.1} parent=15 // pred_check_branch
          %227 = sbr.rel (%p225) target = $region24
        $region23: #{tpu_custom_call.1} parent=15 // pred_region
          %s228 = sand.u32 %s86, 1
          %s229 = scalar_lea.sflag [#allocation9], %s228
          %s230 = sand.u32 %s86, 1
          %s231 = smul.addr %s230, 4
          %s232 = scalar_lea.vmem [#allocation8], %s231
          %s233 = sadd.s32 %s31, %s32
          %s235 = ssub.s32 64, 64
          %236 = vsyncadd %s229, %s235
          %s237 = sadd.s32 %s233, %s30
          %s238 = smul.addr %s237, 64
          %s239 = scalar_lea.hbm %s1, %s238
          %s241 = sshll.u32 %s232, 4
          %s242 = int_to_ptr.vmem [resolvable:$true] %s241
          %244 = dma.hbm_to_vmem [thread:$0]  %s239, 64, %s242, %s229
        $region24: #{tpu_custom_call.1} parent=15 // pred_fallthru
          _
      $region16: #{tpu_custom_call.1} parent=5 // pred_fallthru
        _
      %p245 = scmp.le.s32.totalorder 1, %s23
      %p246 = scmp.lt.s32.totalorder %s23, 3
      %p247 = pnand %p245, %p246
      %p248 = pneg %p247
      // Predicated region
      $region25: #{tpu_custom_call.1} parent=5 // pred_check
        _
      $region26: #{tpu_custom_call.1} parent=5 // pred_check_branch
        %250 = sbr.rel (%p247) target = $region28
      $region27: #{tpu_custom_call.1} parent=5 // pred_region
        %s251 = ssub.s32 %s23, 1
        %s252 = sand.u32 %s59, 1
        %s253 = scalar_lea.sflag [#allocation6], %s252
        %s254 = sand.u32 %s59, 1
        %s255 = smul.addr %s254, 4
        %s256 = scalar_lea.vmem [#allocation5], %s255
        // Predicated region
        $region29: #{tpu_custom_call.1} parent=27 // pred_check
          %p257 = pneg %p72
        $region30: #{tpu_custom_call.1} parent=27 // pred_check_branch
          %259 = sbr.rel (%p257) target = $region32
        $region31: #{tpu_custom_call.1} parent=27 // pred_region
          %260 = dma.done %s253, 64
        $region32: #{tpu_custom_call.1} parent=27 // pred_fallthru
          _
        %s261 = sand.u32 %s89, 1
        %s262 = scalar_lea.sflag [#allocation9], %s261
        %s263 = sand.u32 %s89, 1
        %s264 = smul.addr %s263, 4
        %s265 = scalar_lea.vmem [#allocation8], %s264
        // Predicated region
        $region33: #{tpu_custom_call.1} parent=27 // pred_check
          %p266 = pneg %p102
        $region34: #{tpu_custom_call.1} parent=27 // pred_check_branch
          %268 = sbr.rel (%p266) target = $region36
        $region35: #{tpu_custom_call.1} parent=27 // pred_region
          %269 = dma.done %s262, 64
        $region36: #{tpu_custom_call.1} parent=27 // pred_fallthru
          _
        %s270 = sand.u32 %s59, 1
        %s271 = scalar_lea.sflag [#allocation6], %s270
        %s272 = sand.u32 %s59, 1
        %s273 = smul.addr %s272, 4
        %s274 = scalar_lea.vmem [#allocation5], %s273
        %p275 = pneg %p72
        %p276 = pneg %p69
        %s277 = sand.u32 %s89, 1
        %s278 = scalar_lea.sflag [#allocation9], %s277
        %s279 = sand.u32 %s89, 1
        %s280 = smul.addr %s279, 4
        %s281 = scalar_lea.vmem [#allocation8], %s280
        %p282 = pneg %p102
        %p283 = pneg %p99
        %p284 = pneg %p130
        %p285 = pneg %p127
        %s286 = sand.u32 %s117, 1
        %s287 = scalar_lea.sflag [#allocation7], %s286
        %s288 = sand.u32 %s117, 1
        %s289 = scalar_lea.vmem [#allocation10], %s288
        %p290 = pneg %p158
        %p291 = pneg %p155
        %s292 = sand.u32 %s28, 1
        %s293 = scalar_lea.sflag [#allocation12], %s292
        %s294 = sand.u32 %s145, 1
        %s295 = scalar_lea.vmem [#allocation11], %s294
        %p296 = pneg %p186
        %p297 = pneg %p183
        %s298 = sand.u32 %s28, 1
        %s299 = scalar_lea.sflag [#allocation12], %s298
        %s300 = sand.u32 %s173, 1
        %s301 = scalar_lea.vmem [#allocation13], %s300
        %s302 = sadd.s32 %s34, %s35
        %s303 = sadd.s32 %s34, %s35
        %p304 = scmp.eq.s32.totalorder %s35, 0
        // Predicated region
        $region37: #{tpu_custom_call.1} parent=27 // pred_check
          %p305 = pneg %p304
        $region38: #{tpu_custom_call.1} parent=27 // pred_check_branch
          %307 = sbr.rel (%p305) target = $region40
        $region39: #{tpu_custom_call.1} parent=27 // pred_region
          %308 = vst [vmem:[#allocation2] sm:$0xf] 0.0
          %309 = vst [vmem:[#allocation3] sm:$0xf] 0.0
          %310 = vst [vmem:[#allocation4] sm:$0x1] 0.0
        $region40: #{tpu_custom_call.1} parent=27 // pred_fallthru
          _
        %v311 = vld [vmem:[%s256] sm:$0xf]
        %v312 = vld [vmem:[%s265] sm:$0xf]
        %v313 = vld [vmem:[#allocation2] sm:$0xf]
        %v314 = vmul.f32 %v312, %v311
        %v315 = vadd.f32 %v313, %v314
        %316 = vst [vmem:[#allocation2] sm:$0xf] %v315
        %v317 = vld [vmem:[#allocation3] sm:$0xf]
        %v318 = vadd.f32 %v312, %v311
        %v319 = vadd.f32 %v317, %v318
        %320 = vst [vmem:[#allocation3] sm:$0xf] %v319
        %vm321 = vcmask 1043456
        %v322 = vsel %vm321, %v311, -inf
        %v323 = vrot.slane %v322, 4
        %v324 = vmax.f32 %v322, %v323
        %v325 = vrot.slane %v324, 2
        %v326 = vmax.f32 %v324, %v325
        %v327 = vrot.slane %v326, 1
        %v328 = vmax.f32 %v326, %v327
        %v329 = vsub.f32 %v311, %v328
        %v330 = vmul.f32 %v329, 1.442695
        %v331 = vpow.pop %v330
        %v332 = vsel %vm321, %v331, 0.0
        %v333 = vrot.slane %v332, 4
        %v334 = vadd.f32 %v332, %v333
        %v335 = vrot.slane %v334, 2
        %v336 = vadd.f32 %v334, %v335
        %v337 = vrot.slane %v336, 1
        %v338 = vadd.f32 %v336, %v337
        %v339 = vlog2.pop %v338
        %v340 = vmul.f32 %v339, 0.6931472
        %v341 = vsel %vm321, %v312, 0.0
        %v342 = vrot.slane %v341, 4
        %v343 = vadd.f32 %v341, %v342
        %v344 = vrot.slane %v343, 2
        %v345 = vadd.f32 %v343, %v344
        %v346 = vrot.slane %v345, 1
        %v347 = vadd.f32 %v345, %v346
        %v348 = vmul.f32 %v312, %v329
        %v349 = vsel %vm321, %v348, 0.0
        %v350 = vrot.slane %v349, 4
        %v351 = vadd.f32 %v349, %v350
        %v352 = vrot.slane %v351, 2
        %v353 = vadd.f32 %v351, %v352
        %v354 = vrot.slane %v353, 1
        %v355 = vadd.f32 %v353, %v354
        %v356 = vld [vmem:[#allocation4] sm:$0x1]
        %v357 = vmul.f32 %v340, %v347
        %v358 = vsub.f32 %v357, %v355
        %v359 = vadd.f32 %v356, %v358
        %360 = vst [vmem:[#allocation4] sm:$0x1] %v359
        // Predicated region
        $region41: #{tpu_custom_call.1} parent=27 // pred_check
          %p361 = pneg %p304
        $region42: #{tpu_custom_call.1} parent=27 // pred_check_branch
          %363 = sbr.rel (%p361) target = $region44
        $region43: #{tpu_custom_call.1} parent=27 // pred_region
          %v364 = vld [vmem:[#allocation2] sm:$0xf]
          %v365 = vsel %vm321, %v364, 0.0
          %366 = vadd.xlane.f32.xlu0 %v365
          %v367 = vpop.xlane.xlu0 %366
          %v368 = vld [vmem:[#allocation3] sm:$0xf]
          %v369 = vsel %vm321, %v368, 0.0
          %370 = vadd.xlane.f32.xlu0 %v369
          %v371 = vpop.xlane.xlu0 %370
          %v372 = vld [vmem:[#allocation4] sm:$0x1]
          %vm373 = vcmask 1040384
          %v374 = vsel %vm373, %v372, 0.0
          %375 = vadd.xlane.f32.xlu0 %v374
          %v376 = vpop.xlane.xlu0 %375
          %v377 = vrot.slane %v376, 4
          %v378 = vadd.f32 %v376, %v377
          %v379 = vrot.slane %v378, 2
          %v380 = vadd.f32 %v378, %v379
          %v381 = vrot.slane %v380, 1
          %v382 = vadd.f32 %v380, %v381
          %s383 = vtos %v382
          %v385 = vlaneseq
          %v386 = vand.u32 %v385, 127
          %v387 = vlaneseq
          %v388 = vshrl.u32 %v387, 7
          %v389 = vsub.s32 %v386, %v388
          %v390 = vrot.slane %v367, %v389
          %vm392 = vcmask 24576
          %393 = vst.msk [vmem:[%s289] sm:$0x1] %vm392, %v390
          %v395 = vlaneseq
          %v396 = vshrl.u32 %v395, 7
          %v397 = vsub.s32 %v386, %v396
          %v398 = vrot.slane %v371, %v397
          %400 = vst.msk [vmem:[%s295] sm:$0x1] %vm392, %v398
          %v401 = vstv %s383
          %402 = vst.msk [vmem:[%s301] sm:$0x1] %vm392, %v401
        $region44: #{tpu_custom_call.1} parent=27 // pred_fallthru
          _
        %s403 = sand.u32 %s117, 1
        %s404 = scalar_lea.sflag [#allocation7], %s403
        %s405 = sand.u32 %s117, 1
        %s406 = scalar_lea.vmem [#allocation10], %s405
        %s407 = sand.u32 %s28, 1
        %s408 = scalar_lea.sflag [#allocation12], %s407
        %s409 = sand.u32 %s145, 1
        %s410 = scalar_lea.vmem [#allocation11], %s409
        %s411 = sand.u32 %s28, 1
        %s412 = scalar_lea.sflag [#allocation12], %s411
        %s413 = sand.u32 %s173, 1
        %s414 = scalar_lea.vmem [#allocation13], %s413
        // Predicated region
        $region45: #{tpu_custom_call.1} parent=27 // pred_check
          %p415 = pneg %p127
        $region46: #{tpu_custom_call.1} parent=27 // pred_check_branch
          %417 = sbr.rel (%p415) target = $region48
        $region47: #{tpu_custom_call.1} parent=27 // pred_region
          %s419 = ssub.s32 16, 16
          %420 = vsyncadd %s404, %s419
          %s421 = sadd.s32 %s34, %s33
          %s422 = smul.addr %s421, 16
          %s423 = scalar_lea.hbm %s2, %s422
          %s425 = sshll.u32 %s406, 4
          %s426 = int_to_ptr.vmem [resolvable:$true] %s425
          %428 = dma.vmem_to_hbm [thread:$0]  %s426, 16, %s423, %s404
        $region48: #{tpu_custom_call.1} parent=27 // pred_fallthru
          _
        // Predicated region
        $region49: #{tpu_custom_call.1} parent=27 // pred_check
          %p429 = pneg %p155
        $region50: #{tpu_custom_call.1} parent=27 // pred_check_branch
          %431 = sbr.rel (%p429) target = $region52
        $region51: #{tpu_custom_call.1} parent=27 // pred_region
          %s433 = ssub.s32 16, 16
          %434 = vsyncadd %s408, %s433
          %s435 = sadd.s32 %s34, %s33
          %s436 = smul.addr %s435, 16
          %s437 = scalar_lea.hbm %s3, %s436
          %s439 = sshll.u32 %s410, 4
          %s440 = int_to_ptr.vmem [resolvable:$true] %s439
          %442 = dma.vmem_to_hbm [thread:$0]  %s440, 16, %s437, %s408
        $region52: #{tpu_custom_call.1} parent=27 // pred_fallthru
          _
        // Predicated region
        $region53: #{tpu_custom_call.1} parent=27 // pred_check
          %p443 = pneg %p183
        $region54: #{tpu_custom_call.1} parent=27 // pred_check_branch
          %445 = sbr.rel (%p443) target = $region56
        $region55: #{tpu_custom_call.1} parent=27 // pred_region
          %s447 = ssub.s32 16, 16
          %448 = vsyncadd %s412, %s447
          %s449 = sadd.s32 %s34, %s33
          %s450 = smul.addr %s449, 16
          %s451 = scalar_lea.hbm %s4, %s450
          %s453 = sshll.u32 %s414, 4
          %s454 = int_to_ptr.vmem [resolvable:$true] %s453
          %456 = dma.vmem_to_hbm [thread:$0]  %s454, 16, %s451, %s412
        $region56: #{tpu_custom_call.1} parent=27 // pred_fallthru
          _
      $region28: #{tpu_custom_call.1} parent=5 // pred_fallthru
        _
      %p457 = scmp.le.s32.totalorder 2, %s23
      // Predicated region
      $region57: #{tpu_custom_call.1} parent=5 // pred_check
        %p458 = pneg %p457
      $region58: #{tpu_custom_call.1} parent=5 // pred_check_branch
        %460 = sbr.rel (%p458) target = $region60
      $region59: #{tpu_custom_call.1} parent=5 // pred_region
        %s461 = ssub.s32 %s23, 2
        // Predicated region
        $region61: #{tpu_custom_call.1} parent=59 // pred_check
          %p462 = pneg %p133
        $region62: #{tpu_custom_call.1} parent=59 // pred_check_branch
          %464 = sbr.rel (%p462) target = $region64
        $region63: #{tpu_custom_call.1} parent=59 // pred_region
          %s465 = sand.u32 %s118, 1
          %s466 = scalar_lea.sflag [#allocation7], %s465
          %s467 = sand.u32 %s118, 1
          %s468 = scalar_lea.vmem [#allocation10], %s467
          %469 = dma.done %s466, 16
        $region64: #{tpu_custom_call.1} parent=59 // pred_fallthru
          _
        // Predicated region
        $region65: #{tpu_custom_call.1} parent=59 // pred_check
          %p470 = pneg %p161
        $region66: #{tpu_custom_call.1} parent=59 // pred_check_branch
          %472 = sbr.rel (%p470) target = $region68
        $region67: #{tpu_custom_call.1} parent=59 // pred_region
          %s473 = sand.u32 %s29, 1
          %s474 = scalar_lea.sflag [#allocation12], %s473
          %s475 = sand.u32 %s146, 1
          %s476 = scalar_lea.vmem [#allocation11], %s475
          %477 = dma.done %s474, 16
        $region68: #{tpu_custom_call.1} parent=59 // pred_fallthru
          _
        // Predicated region
        $region69: #{tpu_custom_call.1} parent=59 // pred_check
          %p478 = pneg %p189
        $region70: #{tpu_custom_call.1} parent=59 // pred_check_branch
          %480 = sbr.rel (%p478) target = $region72
        $region71: #{tpu_custom_call.1} parent=59 // pred_region
          %s481 = sand.u32 %s29, 1
          %s482 = scalar_lea.sflag [#allocation12], %s481
          %s483 = sand.u32 %s174, 1
          %s484 = scalar_lea.vmem [#allocation13], %s483
          %485 = dma.done %s482, 16
        $region72: #{tpu_custom_call.1} parent=59 // pred_fallthru
          _
      $region60: #{tpu_custom_call.1} parent=5 // pred_fallthru
        _
    $region6: #{tpu_custom_call.1} parent=1 // loop_footer
      %s27 = sadd.s32 1, %s23
    $region7: #{tpu_custom_call.1} parent=1 // loop_footer_branch
      %22 = sbr.rel target = $region3
    $region8: #{tpu_custom_call.1} parent=1 // loop_exit
      _
    %486 = vsyncpa [#allocation6], 1
    %s487 = scalar_lea.sflag [#allocation6], 1
    %488 = vsyncpa %s487, 1
    %489 = vsyncpa [#allocation9], 1
    %s490 = scalar_lea.sflag [#allocation9], 1
    %491 = vsyncpa %s490, 1
    %492 = vsyncpa [#allocation7], 1
    %s493 = scalar_lea.sflag [#allocation7], 1
    %494 = vsyncpa %s493, 1
    %495 = vsyncpa [#allocation12], 1
    %s496 = scalar_lea.sflag [#allocation12], 1
    %497 = vsyncpa %s496, 1

</llo_original>
